<compile_context>
chip_gen: v6e
topology: v6e:2x2x1
jax: 0.10.0
libtpu: 0.0.40
codegen_flags: <defaults>
</compile_context>

<pallas_src>
import functools

import jax
import jax.numpy as jnp
from jax import lax
from jax.experimental import pallas as pl
from jax.experimental.pallas import tpu as pltpu


def _round_up(x, m):
    return ((x + m - 1) // m) * m


def _dyn_conv_kernel(w_ref, x_ref, o_ref, patches_ref, *,
                     taps_k, row_stride, cin, p_pad, hw_block):
    """One (sample, spatial tile) grid step.

    w_ref       : (Cout, P_pad)      merged per-sample weight slab (taps x Cin)
    x_ref       : (Cin, win)         flattened padded-image window (tile + halo)
    o_ref       : (Cout, hw_block)   lane-dense output tile
    patches_ref : (P_pad, hw_block)  VMEM scratch: im2col slab for this tile
    """
    n_taps = taps_k * taps_k

    # Build the K*K shifted rows of the im2col slab in VMEM (never in HBM).
    # Every tap is a *static* contiguous lane slice of the padded window.
    for r in range(n_taps):
        di, dj = divmod(r, taps_k)
        off = di * row_stride + dj
        patches_ref[r * cin:(r + 1) * cin, :] = x_ref[:, off:off + hw_block]

    # Zero the contraction-padding rows (scratch memory is uninitialised and
    # 0 * NaN would otherwise poison the matmul).
    pad_rows = p_pad - n_taps * cin
    if pad_rows:
        patches_ref[n_taps * cin:p_pad, :] = jnp.zeros(
            (pad_rows, hw_block), patches_ref.dtype)

    # Single MXU contraction per tile, f32 accumulation.
    acc = jnp.dot(w_ref[...], patches_ref[...],
                  preferred_element_type=jnp.float32)
    o_ref[...] = acc.astype(o_ref.dtype)


def dynamic_conv2d(x_nchw, router_w, router_b, expert_weights, kernel_list,
                   *, stream_dtype=None, hw_block_max=2048):
    """Forward pass of DynamicConv2d.

    x_nchw          : [B, Cin, H, W]
    router_w        : [E, Cin]   (nn.Linear weight)
    router_b        : [E]        (nn.Linear bias)
    expert_weights  : list of [E, Cout, Cin, k, k], one per kernel size (k odd)
    stream_dtype    : optional dtype for the HBM-streamed x / weight slabs
                      (e.g. jnp.bfloat16 halves the dominant HBM stream;
                      accumulation stays f32 on the MXU).
    returns         : [B, Cout, H, W]
    """
    B, Cin, H, W = x_nchw.shape
    Cout = expert_weights[0].shape[1]
    p = max(kernel_list) // 2
    K = 2 * p + 1                       # merged effective kernel size
    Hp, Wp = H + 2 * p, W + 2 * p
    n_taps = K * K
    P = n_taps * Cin                    # contraction length
    P_pad = _round_up(P, 8)
    sd = x_nchw.dtype if stream_dtype is None else stream_dtype

    # ---- router: AdaptiveAvgPool2d(1) -> Flatten -> Linear -> Softmax (glue) --
    pooled = jnp.mean(x_nchw, axis=(2, 3))                     # [B, Cin]
    routing = jax.nn.softmax(pooled @ router_w.T + router_b, axis=1)

    # ---- fold the multi-scale expert mix into ONE KxK kernel per sample ------
    # conv is linear in its weights, so sum_k conv(x, W_k, pad=k//2) ==
    # conv(x, sum_k center_embed(W_k, KxK), pad=p): exact, fewer taps.
    w_eff = jnp.zeros((B, Cout, Cin, K, K), jnp.float32)
    for wk, k in zip(expert_weights, kernel_list):
        cw = jnp.einsum('be,eocij->bocij', routing, wk)        # [B, O, C, k, k]
        off = p - k // 2
        w_eff = w_eff.at[:, :, :, off:off + k, off:off + k].add(cw)
    # slab columns ordered (di, dj, c) to match the kernel's tap rows
    w_slab = jnp.transpose(w_eff, (0, 1, 3, 4, 2)).reshape(B, Cout, P)
    w_slab = jnp.pad(w_slab, ((0, 0), (0, 0), (0, P_pad - P))).astype(sd)

    # ---- spatial tiling over the flattened padded-width axis ----------------
    HWp = H * Wp                        # output is computed at row stride Wp
    hw_block = min(hw_block_max, _round_up(HWp, 128))
    # keep the (P_pad x hw_block) im2col scratch within a few MiB of VMEM
    budget_lanes = max(
        512, ((4 << 20) // (P_pad * jnp.dtype(sd).itemsize)) // 128 * 128)
    hw_block = min(hw_block, budget_lanes)          # multiple of 128
    HWp_pad = _round_up(HWp, hw_block)
    n_tiles = HWp_pad // hw_block
    halo = _round_up((K - 1) * (Wp + 1), 128)       # max tap offset, rounded
    win = hw_block + halo
    L = HWp_pad + halo                              # >= Hp*Wp + K - 1 always

    # flattened fully padded image, zero-extended so every tile window exists
    x_flat = jnp.pad(x_nchw, ((0, 0), (0, 0), (p, p), (p, p)))
    x_flat = x_flat.reshape(B, Cin, Hp * Wp)
    assert L >= Hp * Wp
    x_flat = jnp.pad(x_flat, ((0, 0), (0, 0), (0, L - Hp * Wp))).astype(sd)

    # per-tile windows (tile + halo): ~ (1 + halo/hw_block) x the input, a far
    # cry from the old 25x im2col tensor.
    # TODO(synk): for very large images, replace this wrapper-side overlapping
    # window copy with an in-kernel hw_block-aligned dynamic slice or a manual
    # halo DMA to drop the remaining ~1.0x duplicate stream.
    x_tiles = jnp.stack(
        [x_flat[:, :, t * hw_block: t * hw_block + win] for t in range(n_tiles)],
        axis=1)                                     # [B, n_tiles, Cin, win]

    kernel = functools.partial(
        _dyn_conv_kernel, taps_k=K, row_stride=Wp, cin=Cin, p_pad=P_pad,
        hw_block=hw_block)

    out_flat = pl.pallas_call(
        kernel,
        out_shape=jax.ShapeDtypeStruct((B, Cout, HWp_pad), x_nchw.dtype),
        grid=(B, n_tiles),
        in_specs=[
            # constant block index across spatial steps -> weight slab is
            # DMA'd once per sample, not per tile.
            pl.BlockSpec((None, Cout, P_pad), lambda b, s: (b, 0, 0)),
            # one padded-image window per (sample, tile); VMEM stays bounded
            # no matter how large H*W gets.  (pl.Buffered(3) could be added
            # here to hide DMA start latency once compute is this small.)
            pl.BlockSpec((None, None, Cin, win), lambda b, s: (b, s, 0, 0)),
        ],
        out_specs=pl.BlockSpec((None, Cout, hw_block), lambda b, s: (b, 0, s)),
        scratch_shapes=[
            pltpu.VMEM((P_pad, hw_block), sd),      # in-VMEM im2col slab
        ],
        compiler_params=pltpu.CompilerParams(
            # independent (sample, tile) blocks -> shardable across v7x's 2 TCs
            dimension_semantics=("parallel", "parallel")),
    )(w_slab, x_tiles)

    # lane-dense (B, Cout, H*Wp) -> NCHW: drop the padded tail and the 2p junk
    # columns per row (pure reshape/slice, no transpose).
    out = out_flat[:, :, :HWp].reshape(B, Cout, H, Wp)[:, :, :, :W]
    return out


def _reference(x_nchw, router_w, router_b, expert_weights, kernel_list):
    """Pure-JAX reference matching the PyTorch semantics (per-sample grouped conv)."""
    B, Cin, H, W = x_nchw.shape
    pooled = jnp.mean(x_nchw, axis=(2, 3))
    routing = jax.nn.softmax(pooled @ router_w.T + router_b, axis=1)
    total = 0.0
    for wk, k in zip(expert_weights, kernel_list):
        cw = jnp.einsum('be,eocij->bocij', routing, wk)        # [B, O, C, k, k]
        pd = k // 2
        outs = []
        for b in range(B):
            ob = lax.conv_general_dilated(
                x_nchw[b:b + 1], cw[b],
                window_strides=(1, 1), padding=[(pd, pd), (pd, pd)],
                dimension_numbers=('NCHW', 'OIHW', 'NCHW'),
                precision=lax.Precision.HIGHEST)
            outs.append(ob)
        total = total + jnp.concatenate(outs, axis=0)
    return total


if __name__ == "__main__":
    # small, module-consistent shapes
    B, Cin, Cout, H, W = 2, 4, 8, 16, 16
    kernel_list = [3, 5]
    E = 4

    key = jax.random.PRNGKey(0)
    kx, krw, krb, *kws = jax.random.split(key, 3 + len(kernel_list))

    x = jax.random.normal(kx, (B, Cin, H, W), dtype=jnp.float32)
    router_w = jax.random.normal(krw, (E, Cin), dtype=jnp.float32) * 0.5
    router_b = jax.random.normal(krb, (E,), dtype=jnp.float32) * 0.1
    expert_weights = [
        jax.random.normal(kk, (E, Cout, Cin, ks, ks), dtype=jnp.float32)
        for kk, ks in zip(kws, kernel_list)
    ]

    ref = _reference(x, router_w, router_b, expert_weights, kernel_list)

    # f32-streamed path.  Tolerance accounts for the MXU's default matmul
    # precision (bf16 passes) vs the HIGHEST-precision conv reference.
    out = dynamic_conv2d(x, router_w, router_b, expert_weights, kernel_list)
    out = jax.block_until_ready(out)
    assert out.shape == (B, Cout, H, W), out.shape
    assert jnp.allclose(out, ref, rtol=5e-2, atol=2e-1), float(
        jnp.max(jnp.abs(out - ref)))

    # bf16-streamed path (halves the dominant HBM stream, f32 accumulation).
    out_bf16 = dynamic_conv2d(x, router_w, router_b, expert_weights,
                              kernel_list, stream_dtype=jnp.bfloat16)
    out_bf16 = jax.block_until_ready(out_bf16)
    assert out_bf16.shape == (B, Cout, H, W), out_bf16.shape
    assert jnp.allclose(out_bf16, ref, rtol=5e-2, atol=2.5e-1), float(
        jnp.max(jnp.abs(out_bf16 - ref)))

    print("KERNEL_OK")
</pallas_src>

<mosaic_0001>
module attributes {stable_mosaic.version = 11 : i64} {
  func.func @_dyn_conv_kernel(%arg0: i32, %arg1: i32, %arg2: memref<1x8x104xf32, #tpu.memory_space<vmem>>, %arg3: memref<1x1x4x512xf32, #tpu.memory_space<vmem>>, %arg4: memref<1x8x384xf32, #tpu.memory_space<vmem>>, %arg5: memref<104x384xf32, #tpu.memory_space<vmem>>) attributes {dimension_semantics = [#tpu.dimension_semantics<parallel>, #tpu.dimension_semantics<parallel>], iteration_bounds = array<i64: 2, 1>, scalar_prefetch = 0 : i64, scratch_operands = 1 : i64, tpu.core_type = #tpu.core_type<tc>, window_params = [{transform_indices = @transform_0, window_bounds = array<i64: 1, 8, 104>}, {transform_indices = @transform_1, window_bounds = array<i64: 1, 1, 4, 512>}, {transform_indices = @transform_2, window_bounds = array<i64: 1, 8, 384>}]} {
    %c0 = arith.constant 0 : index
    %c0_0 = arith.constant 0 : index
    %c0_1 = arith.constant 0 : index
    %c0_2 = arith.constant 0 : index
    %0 = vector.load %arg3[%c0, %c0_0, %c0_1, %c0_2] : memref<1x1x4x512xf32, #tpu.memory_space<vmem>>, vector<1x1x4x384xf32>
    %1 = vector.shape_cast %0 : vector<1x1x4x384xf32> to vector<4x384xf32>
    %c0_3 = arith.constant 0 : index
    %c0_4 = arith.constant 0 : index
    %2 = vector.load %arg5[%c0_3, %c0_4] : memref<104x384xf32, #tpu.memory_space<vmem>>, vector<4x384xf32>
    tpu.vector_store %arg5[%c0_3, %c0_4], %1 {strides = array<i32>} : memref<104x384xf32, #tpu.memory_space<vmem>>, vector<4x384xf32>,
    %c0_5 = arith.constant 0 : index
    %c0_6 = arith.constant 0 : index
    %c0_7 = arith.constant 0 : index
    %c1 = arith.constant 1 : index
    %3 = vector.load %arg3[%c0_5, %c0_6, %c0_7, %c1] : memref<1x1x4x512xf32, #tpu.memory_space<vmem>>, vector<1x1x4x384xf32>
    %4 = vector.shape_cast %3 : vector<1x1x4x384xf32> to vector<4x384xf32>
    %c4 = arith.constant 4 : index
    %c0_8 = arith.constant 0 : index
    %5 = vector.load %arg5[%c4, %c0_8] : memref<104x384xf32, #tpu.memory_space<vmem>>, vector<4x384xf32>
    tpu.vector_store %arg5[%c4, %c0_8], %4 {strides = array<i32>} : memref<104x384xf32, #tpu.memory_space<vmem>>, vector<4x384xf32>,
    %c0_9 = arith.constant 0 : index
    %c0_10 = arith.constant 0 : index
    %c0_11 = arith.constant 0 : index
    %c2 = arith.constant 2 : index
    %6 = vector.load %arg3[%c0_9, %c0_10, %c0_11, %c2] : memref<1x1x4x512xf32, #tpu.memory_space<vmem>>, vector<1x1x4x384xf32>
    %7 = vector.shape_cast %6 : vector<1x1x4x384xf32> to vector<4x384xf32>
    %c8 = arith.constant 8 : index
    %c0_12 = arith.constant 0 : index
    %8 = vector.load %arg5[%c8, %c0_12] : memref<104x384xf32, #tpu.memory_space<vmem>>, vector<4x384xf32>
    tpu.vector_store %arg5[%c8, %c0_12], %7 {strides = array<i32>} : memref<104x384xf32, #tpu.memory_space<vmem>>, vector<4x384xf32>,
    %c0_13 = arith.constant 0 : index
    %c0_14 = arith.constant 0 : index
    %c0_15 = arith.constant 0 : index
    %c3 = arith.constant 3 : index
    %9 = vector.load %arg3[%c0_13, %c0_14, %c0_15, %c3] : memref<1x1x4x512xf32, #tpu.memory_space<vmem>>, vector<1x1x4x384xf32>
    %10 = vector.shape_cast %9 : vector<1x1x4x384xf32> to vector<4x384xf32>
    %c12 = arith.constant 12 : index
    %c0_16 = arith.constant 0 : index
    %11 = vector.load %arg5[%c12, %c0_16] : memref<104x384xf32, #tpu.memory_space<vmem>>, vector<4x384xf32>
    tpu.vector_store %arg5[%c12, %c0_16], %10 {strides = array<i32>} : memref<104x384xf32, #tpu.memory_space<vmem>>, vector<4x384xf32>,
    %c0_17 = arith.constant 0 : index
    %c0_18 = arith.constant 0 : index
    %c0_19 = arith.constant 0 : index
    %c4_20 = arith.constant 4 : index
    %12 = vector.load %arg3[%c0_17, %c0_18, %c0_19, %c4_20] : memref<1x1x4x512xf32, #tpu.memory_space<vmem>>, vector<1x1x4x384xf32>
    %13 = vector.shape_cast %12 : vector<1x1x4x384xf32> to vector<4x384xf32>
    %c16 = arith.constant 16 : index
    %c0_21 = arith.constant 0 : index
    %14 = vector.load %arg5[%c16, %c0_21] : memref<104x384xf32, #tpu.memory_space<vmem>>, vector<4x384xf32>
    tpu.vector_store %arg5[%c16, %c0_21], %13 {strides = array<i32>} : memref<104x384xf32, #tpu.memory_space<vmem>>, vector<4x384xf32>,
    %c0_22 = arith.constant 0 : index
    %c0_23 = arith.constant 0 : index
    %c0_24 = arith.constant 0 : index
    %c20 = arith.constant 20 : index
    %15 = vector.load %arg3[%c0_22, %c0_23, %c0_24, %c20] : memref<1x1x4x512xf32, #tpu.memory_space<vmem>>, vector<1x1x4x384xf32>
    %16 = vector.shape_cast %15 : vector<1x1x4x384xf32> to vector<4x384xf32>
    %c20_25 = arith.constant 20 : index
    %c0_26 = arith.constant 0 : index
    %17 = vector.load %arg5[%c20_25, %c0_26] : memref<104x384xf32, #tpu.memory_space<vmem>>, vector<4x384xf32>
    tpu.vector_store %arg5[%c20_25, %c0_26], %16 {strides = array<i32>} : memref<104x384xf32, #tpu.memory_space<vmem>>, vector<4x384xf32>,
    %c0_27 = arith.constant 0 : index
    %c0_28 = arith.constant 0 : index
    %c0_29 = arith.constant 0 : index
    %c21 = arith.constant 21 : index
    %18 = vector.load %arg3[%c0_27, %c0_28, %c0_29, %c21] : memref<1x1x4x512xf32, #tpu.memory_space<vmem>>, vector<1x1x4x384xf32>
    %19 = vector.shape_cast %18 : vector<1x1x4x384xf32> to vector<4x384xf32>
    %c24 = arith.constant 24 : index
    %c0_30 = arith.constant 0 : index
    %20 = vector.load %arg5[%c24, %c0_30] : memref<104x384xf32, #tpu.memory_space<vmem>>, vector<4x384xf32>
    tpu.vector_store %arg5[%c24, %c0_30], %19 {strides = array<i32>} : memref<104x384xf32, #tpu.memory_space<vmem>>, vector<4x384xf32>,
    %c0_31 = arith.constant 0 : index
    %c0_32 = arith.constant 0 : index
    %c0_33 = arith.constant 0 : index
    %c22 = arith.constant 22 : index
    %21 = vector.load %arg3[%c0_31, %c0_32, %c0_33, %c22] : memref<1x1x4x512xf32, #tpu.memory_space<vmem>>, vector<1x1x4x384xf32>
    %22 = vector.shape_cast %21 : vector<1x1x4x384xf32> to vector<4x384xf32>
    %c28 = arith.constant 28 : index
    %c0_34 = arith.constant 0 : index
    %23 = vector.load %arg5[%c28, %c0_34] : memref<104x384xf32, #tpu.memory_space<vmem>>, vector<4x384xf32>
    tpu.vector_store %arg5[%c28, %c0_34], %22 {strides = array<i32>} : memref<104x384xf32, #tpu.memory_space<vmem>>, vector<4x384xf32>,
    %c0_35 = arith.constant 0 : index
    %c0_36 = arith.constant 0 : index
    %c0_37 = arith.constant 0 : index
    %c23 = arith.constant 23 : index
    %24 = vector.load %arg3[%c0_35, %c0_36, %c0_37, %c23] : memref<1x1x4x512xf32, #tpu.memory_space<vmem>>, vector<1x1x4x384xf32>
    %25 = vector.shape_cast %24 : vector<1x1x4x384xf32> to vector<4x384xf32>
    %c32 = arith.constant 32 : index
    %c0_38 = arith.constant 0 : index
    %26 = vector.load %arg5[%c32, %c0_38] : memref<104x384xf32, #tpu.memory_space<vmem>>, vector<4x384xf32>
    tpu.vector_store %arg5[%c32, %c0_38], %25 {strides = array<i32>} : memref<104x384xf32, #tpu.memory_space<vmem>>, vector<4x384xf32>,
    %c0_39 = arith.constant 0 : index
    %c0_40 = arith.constant 0 : index
    %c0_41 = arith.constant 0 : index
    %c24_42 = arith.constant 24 : index
    %27 = vector.load %arg3[%c0_39, %c0_40, %c0_41, %c24_42] : memref<1x1x4x512xf32, #tpu.memory_space<vmem>>, vector<1x1x4x384xf32>
    %28 = vector.shape_cast %27 : vector<1x1x4x384xf32> to vector<4x384xf32>
    %c36 = arith.constant 36 : index
    %c0_43 = arith.constant 0 : index
    %29 = vector.load %arg5[%c36, %c0_43] : memref<104x384xf32, #tpu.memory_space<vmem>>, vector<4x384xf32>
    tpu.vector_store %arg5[%c36, %c0_43], %28 {strides = array<i32>} : memref<104x384xf32, #tpu.memory_space<vmem>>, vector<4x384xf32>,
    %c0_44 = arith.constant 0 : index
    %c0_45 = arith.constant 0 : index
    %c0_46 = arith.constant 0 : index
    %c40 = arith.constant 40 : index
    %30 = vector.load %arg3[%c0_44, %c0_45, %c0_46, %c40] : memref<1x1x4x512xf32, #tpu.memory_space<vmem>>, vector<1x1x4x384xf32>
    %31 = vector.shape_cast %30 : vector<1x1x4x384xf32> to vector<4x384xf32>
    %c40_47 = arith.constant 40 : index
    %c0_48 = arith.constant 0 : index
    %32 = vector.load %arg5[%c40_47, %c0_48] : memref<104x384xf32, #tpu.memory_space<vmem>>, vector<4x384xf32>
    tpu.vector_store %arg5[%c40_47, %c0_48], %31 {strides = array<i32>} : memref<104x384xf32, #tpu.memory_space<vmem>>, vector<4x384xf32>,
    %c0_49 = arith.constant 0 : index
    %c0_50 = arith.constant 0 : index
    %c0_51 = arith.constant 0 : index
    %c41 = arith.constant 41 : index
    %33 = vector.load %arg3[%c0_49, %c0_50, %c0_51, %c41] : memref<1x1x4x512xf32, #tpu.memory_space<vmem>>, vector<1x1x4x384xf32>
    %34 = vector.shape_cast %33 : vector<1x1x4x384xf32> to vector<4x384xf32>
    %c44 = arith.constant 44 : index
    %c0_52 = arith.constant 0 : index
    %35 = vector.load %arg5[%c44, %c0_52] : memref<104x384xf32, #tpu.memory_space<vmem>>, vector<4x384xf32>
    tpu.vector_store %arg5[%c44, %c0_52], %34 {strides = array<i32>} : memref<104x384xf32, #tpu.memory_space<vmem>>, vector<4x384xf32>,
    %c0_53 = arith.constant 0 : index
    %c0_54 = arith.constant 0 : index
    %c0_55 = arith.constant 0 : index
    %c42 = arith.constant 42 : index
    %36 = vector.load %arg3[%c0_53, %c0_54, %c0_55, %c42] : memref<1x1x4x512xf32, #tpu.memory_space<vmem>>, vector<1x1x4x384xf32>
    %37 = vector.shape_cast %36 : vector<1x1x4x384xf32> to vector<4x384xf32>
    %c48 = arith.constant 48 : index
    %c0_56 = arith.constant 0 : index
    %38 = vector.load %arg5[%c48, %c0_56] : memref<104x384xf32, #tpu.memory_space<vmem>>, vector<4x384xf32>
    tpu.vector_store %arg5[%c48, %c0_56], %37 {strides = array<i32>} : memref<104x384xf32, #tpu.memory_space<vmem>>, vector<4x384xf32>,
    %c0_57 = arith.constant 0 : index
    %c0_58 = arith.constant 0 : index
    %c0_59 = arith.constant 0 : index
    %c43 = arith.constant 43 : index
    %39 = vector.load %arg3[%c0_57, %c0_58, %c0_59, %c43] : memref<1x1x4x512xf32, #tpu.memory_space<vmem>>, vector<1x1x4x384xf32>
    %40 = vector.shape_cast %39 : vector<1x1x4x384xf32> to vector<4x384xf32>
    %c52 = arith.constant 52 : index
    %c0_60 = arith.constant 0 : index
    %41 = vector.load %arg5[%c52, %c0_60] : memref<104x384xf32, #tpu.memory_space<vmem>>, vector<4x384xf32>
    tpu.vector_store %arg5[%c52, %c0_60], %40 {strides = array<i32>} : memref<104x384xf32, #tpu.memory_space<vmem>>, vector<4x384xf32>,
    %c0_61 = arith.constant 0 : index
    %c0_62 = arith.constant 0 : index
    %c0_63 = arith.constant 0 : index
    %c44_64 = arith.constant 44 : index
    %42 = vector.load %arg3[%c0_61, %c0_62, %c0_63, %c44_64] : memref<1x1x4x512xf32, #tpu.memory_space<vmem>>, vector<1x1x4x384xf32>
    %43 = vector.shape_cast %42 : vector<1x1x4x384xf32> to vector<4x384xf32>
    %c56 = arith.constant 56 : index
    %c0_65 = arith.constant 0 : index
    %44 = vector.load %arg5[%c56, %c0_65] : memref<104x384xf32, #tpu.memory_space<vmem>>, vector<4x384xf32>
    tpu.vector_store %arg5[%c56, %c0_65], %43 {strides = array<i32>} : memref<104x384xf32, #tpu.memory_space<vmem>>, vector<4x384xf32>,
    %c0_66 = arith.constant 0 : index
    %c0_67 = arith.constant 0 : index
    %c0_68 = arith.constant 0 : index
    %c60 = arith.constant 60 : index
    %45 = vector.load %arg3[%c0_66, %c0_67, %c0_68, %c60] : memref<1x1x4x512xf32, #tpu.memory_space<vmem>>, vector<1x1x4x384xf32>
    %46 = vector.shape_cast %45 : vector<1x1x4x384xf32> to vector<4x384xf32>
    %c60_69 = arith.constant 60 : index
    %c0_70 = arith.constant 0 : index
    %47 = vector.load %arg5[%c60_69, %c0_70] : memref<104x384xf32, #tpu.memory_space<vmem>>, vector<4x384xf32>
    tpu.vector_store %arg5[%c60_69, %c0_70], %46 {strides = array<i32>} : memref<104x384xf32, #tpu.memory_space<vmem>>, vector<4x384xf32>,
    %c0_71 = arith.constant 0 : index
    %c0_72 = arith.constant 0 : index
    %c0_73 = arith.constant 0 : index
    %c61 = arith.constant 61 : index
    %48 = vector.load %arg3[%c0_71, %c0_72, %c0_73, %c61] : memref<1x1x4x512xf32, #tpu.memory_space<vmem>>, vector<1x1x4x384xf32>
    %49 = vector.shape_cast %48 : vector<1x1x4x384xf32> to vector<4x384xf32>
    %c64 = arith.constant 64 : index
    %c0_74 = arith.constant 0 : index
    %50 = vector.load %arg5[%c64, %c0_74] : memref<104x384xf32, #tpu.memory_space<vmem>>, vector<4x384xf32>
    tpu.vector_store %arg5[%c64, %c0_74], %49 {strides = array<i32>} : memref<104x384xf32, #tpu.memory_space<vmem>>, vector<4x384xf32>,
    %c0_75 = arith.constant 0 : index
    %c0_76 = arith.constant 0 : index
    %c0_77 = arith.constant 0 : index
    %c62 = arith.constant 62 : index
    %51 = vector.load %arg3[%c0_75, %c0_76, %c0_77, %c62] : memref<1x1x4x512xf32, #tpu.memory_space<vmem>>, vector<1x1x4x384xf32>
    %52 = vector.shape_cast %51 : vector<1x1x4x384xf32> to vector<4x384xf32>
    %c68 = arith.constant 68 : index
    %c0_78 = arith.constant 0 : index
    %53 = vector.load %arg5[%c68, %c0_78] : memref<104x384xf32, #tpu.memory_space<vmem>>, vector<4x384xf32>
    tpu.vector_store %arg5[%c68, %c0_78], %52 {strides = array<i32>} : memref<104x384xf32, #tpu.memory_space<vmem>>, vector<4x384xf32>,
    %c0_79 = arith.constant 0 : index
    %c0_80 = arith.constant 0 : index
    %c0_81 = arith.constant 0 : index
    %c63 = arith.constant 63 : index
    %54 = vector.load %arg3[%c0_79, %c0_80, %c0_81, %c63] : memref<1x1x4x512xf32, #tpu.memory_space<vmem>>, vector<1x1x4x384xf32>
    %55 = vector.shape_cast %54 : vector<1x1x4x384xf32> to vector<4x384xf32>
    %c72 = arith.constant 72 : index
    %c0_82 = arith.constant 0 : index
    %56 = vector.load %arg5[%c72, %c0_82] : memref<104x384xf32, #tpu.memory_space<vmem>>, vector<4x384xf32>
    tpu.vector_store %arg5[%c72, %c0_82], %55 {strides = array<i32>} : memref<104x384xf32, #tpu.memory_space<vmem>>, vector<4x384xf32>,
    %c0_83 = arith.constant 0 : index
    %c0_84 = arith.constant 0 : index
    %c0_85 = arith.constant 0 : index
    %c64_86 = arith.constant 64 : index
    %57 = vector.load %arg3[%c0_83, %c0_84, %c0_85, %c64_86] : memref<1x1x4x512xf32, #tpu.memory_space<vmem>>, vector<1x1x4x384xf32>
    %58 = vector.shape_cast %57 : vector<1x1x4x384xf32> to vector<4x384xf32>
    %c76 = arith.constant 76 : index
    %c0_87 = arith.constant 0 : index
    %59 = vector.load %arg5[%c76, %c0_87] : memref<104x384xf32, #tpu.memory_space<vmem>>, vector<4x384xf32>
    tpu.vector_store %arg5[%c76, %c0_87], %58 {strides = array<i32>} : memref<104x384xf32, #tpu.memory_space<vmem>>, vector<4x384xf32>,
    %c0_88 = arith.constant 0 : index
    %c0_89 = arith.constant 0 : index
    %c0_90 = arith.constant 0 : index
    %c80 = arith.constant 80 : index
    %60 = vector.load %arg3[%c0_88, %c0_89, %c0_90, %c80] : memref<1x1x4x512xf32, #tpu.memory_space<vmem>>, vector<1x1x4x384xf32>
    %61 = vector.shape_cast %60 : vector<1x1x4x384xf32> to vector<4x384xf32>
    %c80_91 = arith.constant 80 : index
    %c0_92 = arith.constant 0 : index
    %62 = vector.load %arg5[%c80_91, %c0_92] : memref<104x384xf32, #tpu.memory_space<vmem>>, vector<4x384xf32>
    tpu.vector_store %arg5[%c80_91, %c0_92], %61 {strides = array<i32>} : memref<104x384xf32, #tpu.memory_space<vmem>>, vector<4x384xf32>,
    %c0_93 = arith.constant 0 : index
    %c0_94 = arith.constant 0 : index
    %c0_95 = arith.constant 0 : index
    %c81 = arith.constant 81 : index
    %63 = vector.load %arg3[%c0_93, %c0_94, %c0_95, %c81] : memref<1x1x4x512xf32, #tpu.memory_space<vmem>>, vector<1x1x4x384xf32>
    %64 = vector.shape_cast %63 : vector<1x1x4x384xf32> to vector<4x384xf32>
    %c84 = arith.constant 84 : index
    %c0_96 = arith.constant 0 : index
    %65 = vector.load %arg5[%c84, %c0_96] : memref<104x384xf32, #tpu.memory_space<vmem>>, vector<4x384xf32>
    tpu.vector_store %arg5[%c84, %c0_96], %64 {strides = array<i32>} : memref<104x384xf32, #tpu.memory_space<vmem>>, vector<4x384xf32>,
    %c0_97 = arith.constant 0 : index
    %c0_98 = arith.constant 0 : index
    %c0_99 = arith.constant 0 : index
    %c82 = arith.constant 82 : index
    %66 = vector.load %arg3[%c0_97, %c0_98, %c0_99, %c82] : memref<1x1x4x512xf32, #tpu.memory_space<vmem>>, vector<1x1x4x384xf32>
    %67 = vector.shape_cast %66 : vector<1x1x4x384xf32> to vector<4x384xf32>
    %c88 = arith.constant 88 : index
    %c0_100 = arith.constant 0 : index
    %68 = vector.load %arg5[%c88, %c0_100] : memref<104x384xf32, #tpu.memory_space<vmem>>, vector<4x384xf32>
    tpu.vector_store %arg5[%c88, %c0_100], %67 {strides = array<i32>} : memref<104x384xf32, #tpu.memory_space<vmem>>, vector<4x384xf32>,
    %c0_101 = arith.constant 0 : index
    %c0_102 = arith.constant 0 : index
    %c0_103 = arith.constant 0 : index
    %c83 = arith.constant 83 : index
    %69 = vector.load %arg3[%c0_101, %c0_102, %c0_103, %c83] : memref<1x1x4x512xf32, #tpu.memory_space<vmem>>, vector<1x1x4x384xf32>
    %70 = vector.shape_cast %69 : vector<1x1x4x384xf32> to vector<4x384xf32>
    %c92 = arith.constant 92 : index
    %c0_104 = arith.constant 0 : index
    %71 = vector.load %arg5[%c92, %c0_104] : memref<104x384xf32, #tpu.memory_space<vmem>>, vector<4x384xf32>
    tpu.vector_store %arg5[%c92, %c0_104], %70 {strides = array<i32>} : memref<104x384xf32, #tpu.memory_space<vmem>>, vector<4x384xf32>,
    %c0_105 = arith.constant 0 : index
    %c0_106 = arith.constant 0 : index
    %c0_107 = arith.constant 0 : index
    %c84_108 = arith.constant 84 : index
    %72 = vector.load %arg3[%c0_105, %c0_106, %c0_107, %c84_108] : memref<1x1x4x512xf32, #tpu.memory_space<vmem>>, vector<1x1x4x384xf32>
    %73 = vector.shape_cast %72 : vector<1x1x4x384xf32> to vector<4x384xf32>
    %c96 = arith.constant 96 : index
    %c0_109 = arith.constant 0 : index
    %74 = vector.load %arg5[%c96, %c0_109] : memref<104x384xf32, #tpu.memory_space<vmem>>, vector<4x384xf32>
    tpu.vector_store %arg5[%c96, %c0_109], %73 {strides = array<i32>} : memref<104x384xf32, #tpu.memory_space<vmem>>, vector<4x384xf32>,
    %cst = arith.constant 0.000000e+00 : f32
    %75 = vector.broadcast %cst : f32 to vector<4x384xf32>
    %c100 = arith.constant 100 : index
    %c0_110 = arith.constant 0 : index
    %76 = vector.load %arg5[%c100, %c0_110] : memref<104x384xf32, #tpu.memory_space<vmem>>, vector<4x384xf32>
    tpu.vector_store %arg5[%c100, %c0_110], %75 {strides = array<i32>} : memref<104x384xf32, #tpu.memory_space<vmem>>, vector<4x384xf32>,
    %c0_111 = arith.constant 0 : index
    %c0_112 = arith.constant 0 : index
    %c0_113 = arith.constant 0 : index
    %77 = vector.load %arg2[%c0_111, %c0_112, %c0_113] : memref<1x8x104xf32, #tpu.memory_space<vmem>>, vector<1x8x104xf32>
    %78 = vector.shape_cast %77 : vector<1x8x104xf32> to vector<8x104xf32>
    %c0_114 = arith.constant 0 : index
    %c0_115 = arith.constant 0 : index
    %79 = vector.load %arg5[%c0_114, %c0_115] : memref<104x384xf32, #tpu.memory_space<vmem>>, vector<104x384xf32>
    %cst_116 = arith.constant dense<0.000000e+00> : vector<8x384xf32>
    %80 = tpu.matmul %78, %79, %cst_116 {dimension_numbers = #tpu.dot_dimension_numbers<[1], [0], [0], [1], [0, 0, 1, 1], [], []>} : vector<8x104xf32>, vector<104x384xf32>, vector<8x384xf32> -> vector<8x384xf32>
    %c0_117 = arith.constant 0 : index
    %c0_118 = arith.constant 0 : index
    %c0_119 = arith.constant 0 : index
    %81 = vector.load %arg4[%c0_117, %c0_118, %c0_119] : memref<1x8x384xf32, #tpu.memory_space<vmem>>, vector<1x8x384xf32>
    %82 = vector.shape_cast %81 : vector<1x8x384xf32> to vector<8x384xf32>
    %83 = vector.shape_cast %80 : vector<8x384xf32> to vector<1x8x384xf32>
    tpu.vector_store %arg4[%c0_117, %c0_118, %c0_119], %83 {strides = array<i32>} : memref<1x8x384xf32, #tpu.memory_space<vmem>>, vector<1x8x384xf32>,
    return
  }
  func.func @transform_0(%arg0: i32, %arg1: i32) -> (i32, i32, i32) {
    %c0_i32 = arith.constant 0 : i32
    %c0_i32_0 = arith.constant 0 : i32
    %c0_i32_1 = arith.constant 0 : i32
    return %arg0, %c0_i32, %c0_i32_0 : i32, i32, i32
  }
  func.func @transform_1(%arg0: i32, %arg1: i32) -> (i32, i32, i32, i32) {
    %c0_i32 = arith.constant 0 : i32
    %c0_i32_0 = arith.constant 0 : i32
    %c0_i32_1 = arith.constant 0 : i32
    return %arg0, %arg1, %c0_i32, %c0_i32_0 : i32, i32, i32, i32
  }
  func.func @transform_2(%arg0: i32, %arg1: i32) -> (i32, i32, i32) {
    %c0_i32 = arith.constant 0 : i32
    %c0_i32_0 = arith.constant 0 : i32
    return %arg0, %c0_i32, %arg1 : i32, i32, i32
  }
}

</mosaic_0001>

<llo_original>
// kernel: tpu_custom_call.1
$region0: #{tpu_custom_call.1}
  #allocation0 [shape = 'u32[]', space=smem, size = 0x4, offset = 0x4, fixed_abs, tag = 'smem constant byte address 0x4 - core index']
  #allocation1 [shape = 'u32[144,128]{1,0:T(1,128)}', space=vmem, size = 0x12000, scoped, tag = 'internal scratch']
  #allocation2 [shape = 'f32[104,384]{1,0:T(8,128)}', space=vmem, size = 0x27000, scoped, tag = 'scratch operand']
  %s0 = inlined_call_operand.hbm [shape: f32[2,8,104], index: 0, kind: input, shape index: {}]
  %s1 = inlined_call_operand.hbm [shape: f32[2,1,4,512], index: 1, kind: input, shape index: {}]
  %s2 = inlined_call_operand.hbm [shape: f32[2,8,384], index: 2, kind: output, shape index: {}]
  %s3 = sld [smem:[#allocation0]]
  $region49: #{tpu_custom_call.1} parent=0
    _
  %s5 = ssub.s32 1, %s3
  %s6 = scalar_select 0, %s5, %s3
  $region1: #{tpu_custom_call.1} parent=0
    #allocation3 [shape = 'u8[8192]{0}', space=vmem, size = 0x2000, scoped, tag = 'input window, operand 0']
    #allocation4 [shape = 's32[2]{0}', space=sflag, size = 0x8, scoped, tag = 'scoped memory for tpu_custom_call.1']
    #allocation5 [shape = 's32[2]{0}', space=sflag, size = 0x8, scoped, tag = 'scoped memory for tpu_custom_call.1']
    #allocation6 [shape = 'u8[16384]{0}', space=vmem, size = 0x4000, scoped, tag = 'input window, operand 1']
    #allocation7 [shape = 's32[2]{0}', space=sflag, size = 0x8, scoped, tag = 'scoped memory for tpu_custom_call.1']
    #allocation8 [shape = 'u8[24576]{0}', space=vmem, size = 0x6000, scoped, tag = 'output window, operand 0']
    %7 = vsyncpa [#allocation4], 0
    %s8 = scalar_lea.sflag [#allocation4], 1
    %9 = vsyncpa %s8, 0
    %10 = vsyncpa [#allocation7], 0
    %s11 = scalar_lea.sflag [#allocation7], 1
    %12 = vsyncpa %s11, 0
    %13 = vsyncpa [#allocation5], 0
    %s14 = scalar_lea.sflag [#allocation5], 1
    %15 = vsyncpa %s14, 0
    loop: start=0, step=1, limit=4
    $region2: #{tpu_custom_call.1} parent=1 // loop_pre_header
      _
    $region3: #{tpu_custom_call.1} parent=1 // loop_header
      %s17 = sphi 0, %s21
      %p18 = scmp.ge.s32.totalorder %s17, 4
      %s24 = sphi 0, %s36
      %s25 = sphi 0, %s32
      %s26 = sphi 0, %s24
      %s27 = sphi 0, %s25
      %s28 = sphi 0, %s26
      %s29 = sphi 0, %s27
      %s39 = sphi 0, %s41
      %s42 = sphi 0, %s39
      %s43 = sphi 0, %s42
      %s59 = sphi 0, %s43
      %s67 = sphi 0, %s69
      %s70 = sphi 0, %s67
      %s71 = sphi 0, %s70
      %s87 = sphi 0, %s71
      %s95 = sphi 0, %s97
      %s98 = sphi 0, %s95
      %s99 = sphi 0, %s98
      %s115 = sphi 0, %s99
    $region4: #{tpu_custom_call.1} parent=1 // loop_header_branch
      %20 = sbr.rel (%p18) target = $region8
    $region5: #{tpu_custom_call.1} parent=1 // loop_body
      %s22 = ssub.s32 %s17, 1
      %s23 = ssub.s32 %s17, 2
      %s30 = sadd.s32 1, %s25
      %p31 = scmp.ge.s32.totalorder %s30, 1
      %s32 = scalar_select %p31, 0, %s30
      %s33 = sadd.s32 1, %s24
      %s34 = scalar_select %p31, %s33, %s24
      %p35 = scmp.ge.s32.totalorder %s34, 2
      %s36 = scalar_select %p35, 0, %s34
      %s37 = ssub.s32 %s24, %s36
      %p38 = scmp.eq.s32.totalorder %s37, 0
      %s40 = sadd.s32 %s39, 1
      %s41 = scalar_select %p38, %s39, %s40
      %p44 = pneg %p38
      %p45 = scmp.eq.s32.totalorder %s17, 1
      %p46 = por %p44, %p45
      %p47 = scmp.ne.s32.totalorder %s39, %s42
      %p48 = scmp.eq.s32.totalorder %s17, 0
      %p49 = por %p47, %p48
      %p50 = scmp.ne.s32.totalorder %s39, %s42
      %p51 = scmp.eq.s32.totalorder %s22, 1
      %p52 = por %p50, %p51
      %p53 = scmp.ne.s32.totalorder %s42, %s43
      %p54 = scmp.eq.s32.totalorder %s22, 0
      %p55 = por %p53, %p54
      %p56 = scmp.ne.s32.totalorder %s42, %s43
      %p57 = scmp.eq.s32.totalorder %s23, 1
      %p58 = por %p56, %p57
      %p60 = scmp.ne.s32.totalorder %s43, %s59
      %p61 = scmp.eq.s32.totalorder %s23, 0
      %p62 = por %p60, %p61
      %s63 = ssub.s32 %s24, %s36
      %s64 = ssub.s32 %s25, %s32
      %s65 = sor.u32 %s63, %s64
      %p66 = scmp.eq.s32.totalorder %s65, 0
      %s68 = sadd.s32 %s67, 1
      %s69 = scalar_select %p66, %s67, %s68
      %p72 = pneg %p66
      %p73 = scmp.eq.s32.totalorder %s17, 1
      %p74 = por %p72, %p73
      %p75 = scmp.ne.s32.totalorder %s67, %s70
      %p76 = scmp.eq.s32.totalorder %s17, 0
      %p77 = por %p75, %p76
      %p78 = scmp.ne.s32.totalorder %s67, %s70
      %p79 = scmp.eq.s32.totalorder %s22, 1
      %p80 = por %p78, %p79
      %p81 = scmp.ne.s32.totalorder %s70, %s71
      %p82 = scmp.eq.s32.totalorder %s22, 0
      %p83 = por %p81, %p82
      %p84 = scmp.ne.s32.totalorder %s70, %s71
      %p85 = scmp.eq.s32.totalorder %s23, 1
      %p86 = por %p84, %p85
      %p88 = scmp.ne.s32.totalorder %s71, %s87
      %p89 = scmp.eq.s32.totalorder %s23, 0
      %p90 = por %p88, %p89
      %s91 = ssub.s32 %s24, %s36
      %s92 = ssub.s32 %s25, %s32
      %s93 = sor.u32 %s91, %s92
      %p94 = scmp.eq.s32.totalorder %s93, 0
      %s96 = sadd.s32 %s95, 1
      %s97 = scalar_select %p94, %s95, %s96
      %p100 = pneg %p94
      %p101 = scmp.eq.s32.totalorder %s17, 1
      %p102 = por %p100, %p101
      %p103 = scmp.ne.s32.totalorder %s95, %s98
      %p104 = scmp.eq.s32.totalorder %s17, 0
      %p105 = por %p103, %p104
      %p106 = scmp.ne.s32.totalorder %s95, %s98
      %p107 = scmp.eq.s32.totalorder %s22, 1
      %p108 = por %p106, %p107
      %p109 = scmp.ne.s32.totalorder %s98, %s99
      %p110 = scmp.eq.s32.totalorder %s22, 0
      %p111 = por %p109, %p110
      %p112 = scmp.ne.s32.totalorder %s98, %s99
      %p113 = scmp.eq.s32.totalorder %s23, 1
      %p114 = por %p112, %p113
      %p116 = scmp.ne.s32.totalorder %s99, %s115
      %p117 = scmp.eq.s32.totalorder %s23, 0
      %p118 = por %p116, %p117
      %p119 = scmp.le.s32.totalorder 1, %s17
      %p120 = scmp.lt.s32.totalorder %s17, 3
      %p121 = pnand %p119, %p120
      %p122 = pneg %p121
      // Predicated region
      $region9: #{tpu_custom_call.1} parent=5 // pred_check
        _
      $region10: #{tpu_custom_call.1} parent=5 // pred_check_branch
        %124 = sbr.rel (%p121) target = $region12
      $region11: #{tpu_custom_call.1} parent=5 // pred_region
        %s125 = ssub.s32 %s17, 1
      $region12: #{tpu_custom_call.1} parent=5 // pred_fallthru
        _
      %p126 = scmp.lt.s32.totalorder %s17, 2
      // Predicated region
      $region13: #{tpu_custom_call.1} parent=5 // pred_check
        %p127 = pneg %p126
      $region14: #{tpu_custom_call.1} parent=5 // pred_check_branch
        %129 = sbr.rel (%p127) target = $region16
      $region15: #{tpu_custom_call.1} parent=5 // pred_region
        // Predicated region
        $region17: #{tpu_custom_call.1} parent=15 // pred_check
          %p130 = pneg %p49
        $region18: #{tpu_custom_call.1} parent=15 // pred_check_branch
          %132 = sbr.rel (%p130) target = $region20
        $region19: #{tpu_custom_call.1} parent=15 // pred_region
          %s133 = sand.u32 %s39, 1
          %s134 = scalar_lea.sflag [#allocation4], %s133
          %s135 = sand.u32 %s39, 1
          %s136 = smul.addr %s135, 8
          %s137 = scalar_lea.vmem [#allocation3], %s136
          %s139 = ssub.s32 128, 128
          %140 = vsyncadd %s134, %s139
          %s141 = smul.addr %s24, 128
          %s142 = scalar_lea.hbm %s0, %s141
          %s144 = sshll.u32 %s137, 4
          %s145 = int_to_ptr.vmem [resolvable:$true] %s144
          %147 = dma.hbm_to_vmem [thread:$0]  %s142, 128, %s145, %s134
        $region20: #{tpu_custom_call.1} parent=15 // pred_fallthru
          _
        // Predicated region
        $region21: #{tpu_custom_call.1} parent=15 // pred_check
          %p148 = pneg %p77
        $region22: #{tpu_custom_call.1} parent=15 // pred_check_branch
          %150 = sbr.rel (%p148) target = $region24
        $region23: #{tpu_custom_call.1} parent=15 // pred_region
          %s151 = sand.u32 %s67, 1
          %s152 = scalar_lea.sflag [#allocation7], %s151
          %s153 = sand.u32 %s67, 1
          %s154 = smul.addr %s153, 16
          %s155 = scalar_lea.vmem [#allocation6], %s154
          %s157 = ssub.s32 256, 256
          %158 = vsyncadd %s152, %s157
          %s159 = smul.addr %s25, 4
          %s160 = smul.addr %s24, 4
          %s161 = sadd.s32 %s159, %s160
          %s162 = smul.addr %s161, 64
          %s163 = scalar_lea.hbm %s1, %s162
          %s165 = sshll.u32 %s155, 4
          %s166 = int_to_ptr.vmem [resolvable:$true] %s165
          %168 = dma.hbm_to_vmem [thread:$0]  %s163, 256, %s166, %s152
        $region24: #{tpu_custom_call.1} parent=15 // pred_fallthru
          _
      $region16: #{tpu_custom_call.1} parent=5 // pred_fallthru
        _
      %p169 = scmp.le.s32.totalorder 1, %s17
      %p170 = scmp.lt.s32.totalorder %s17, 3
      %p171 = pnand %p169, %p170
      %p172 = pneg %p171
      // Predicated region
      $region25: #{tpu_custom_call.1} parent=5 // pred_check
        _
      $region26: #{tpu_custom_call.1} parent=5 // pred_check_branch
        %174 = sbr.rel (%p171) target = $region28
      $region27: #{tpu_custom_call.1} parent=5 // pred_region
        %s175 = ssub.s32 %s17, 1
        %s176 = sand.u32 %s42, 1
        %s177 = scalar_lea.sflag [#allocation4], %s176
        %s178 = sand.u32 %s42, 1
        %s179 = smul.addr %s178, 8
        %s180 = scalar_lea.vmem [#allocation3], %s179
        // Predicated region
        $region29: #{tpu_custom_call.1} parent=27 // pred_check
          %p181 = pneg %p55
        $region30: #{tpu_custom_call.1} parent=27 // pred_check_branch
          %183 = sbr.rel (%p181) target = $region32
        $region31: #{tpu_custom_call.1} parent=27 // pred_region
          %184 = dma.done %s177, 128
        $region32: #{tpu_custom_call.1} parent=27 // pred_fallthru
          _
        %s185 = sand.u32 %s70, 1
        %s186 = scalar_lea.sflag [#allocation7], %s185
        %s187 = sand.u32 %s70, 1
        %s188 = smul.addr %s187, 16
        %s189 = scalar_lea.vmem [#allocation6], %s188
        // Predicated region
        $region33: #{tpu_custom_call.1} parent=27 // pred_check
          %p190 = pneg %p83
        $region34: #{tpu_custom_call.1} parent=27 // pred_check_branch
          %192 = sbr.rel (%p190) target = $region36
        $region35: #{tpu_custom_call.1} parent=27 // pred_region
          %193 = dma.done %s186, 256
        $region36: #{tpu_custom_call.1} parent=27 // pred_fallthru
          _
        %s194 = sand.u32 %s42, 1
        %s195 = scalar_lea.sflag [#allocation4], %s194
        %s196 = sand.u32 %s42, 1
        %s197 = smul.addr %s196, 8
        %s198 = scalar_lea.vmem [#allocation3], %s197
        %p199 = pneg %p55
        %p200 = pneg %p52
        %s201 = sand.u32 %s70, 1
        %s202 = scalar_lea.sflag [#allocation7], %s201
        %s203 = sand.u32 %s70, 1
        %s204 = smul.addr %s203, 16
        %s205 = scalar_lea.vmem [#allocation6], %s204
        %p206 = pneg %p83
        %p207 = pneg %p80
        %p208 = pneg %p111
        %p209 = pneg %p108
        %s210 = sand.u32 %s98, 1
        %s211 = scalar_lea.sflag [#allocation5], %s210
        %s212 = sand.u32 %s98, 1
        %s213 = smul.addr %s212, 24
        %s214 = scalar_lea.vmem [#allocation8], %s213
        %s215 = smul.u32 3, %s27
        %v216 = vld [vmem:[%s189] sm:$0xff]
        %v217 = vld [vmem:[%s189 + $0x8] sm:$0xf]
        %v219 = vcombine.high %v216, %v216
        %221 = vst [vmem:[#allocation2] sm:$0xf] %v216
        %222 = vst [vmem:[#allocation2 + $0x8] sm:$0xf] %v219
        %223 = vst [vmem:[#allocation2 + $0x10] sm:$0xf] %v217
        %v224 = vld [vmem:[%s189] sm:$0xff]
        %v225 = vld [vmem:[%s189 + $0x8] sm:$0xff]
        %v228 = vcombine.low %v224, %v224
        %v229 = vcombine.low %v225, %v225
        %230 = vrot.lane.b32.xlu0 %v228, 127
        %v231 = vpop.permute.xlu0 %230
        %232 = vrot.lane.b32.xlu0 %v224, 127
        %v233 = vpop.permute.xlu0 %232
        %234 = vrot.lane.b32.xlu0 %v229, 127
        %v235 = vpop.permute.xlu0 %234
        %236 = vrot.lane.b32.xlu0 %v225, 127
        %v237 = vpop.permute.xlu0 %236
        %vm238 = vcmask 1039360
        %v239 = vsel %vm238, %v231, %v233
        %v240 = vsel %vm238, %v233, %v235
        %v241 = vsel %vm238, %v235, %v237
        %245 = vst [vmem:[#allocation2] sm:$0xf0] %v239
        %246 = vst [vmem:[#allocation2 + $0x8] sm:$0xf0] %v240
        %247 = vst [vmem:[#allocation2 + $0x10] sm:$0xf0] %v241
        %v248 = vld [vmem:[%s189] sm:$0xff]
        %v249 = vld [vmem:[%s189 + $0x8] sm:$0xff]
        %v252 = vcombine.high %v248, %v248
        %v253 = vcombine.high %v249, %v249
        %254 = vrot.lane.b32.xlu0 %v248, 126
        %v255 = vpop.permute.xlu0 %254
        %256 = vrot.lane.b32.xlu0 %v252, 126
        %v257 = vpop.permute.xlu0 %256
        %258 = vrot.lane.b32.xlu0 %v249, 126
        %v259 = vpop.permute.xlu0 %258
        %260 = vrot.lane.b32.xlu0 %v253, 126
        %v261 = vpop.permute.xlu0 %260
        %vm262 = vcmask 1031168
        %v263 = vsel %vm262, %v255, %v257
        %v264 = vsel %vm262, %v257, %v259
        %v265 = vsel %vm262, %v259, %v261
        %269 = vst [vmem:[#allocation2 + $0x18] sm:$0xf] %v263
        %270 = vst [vmem:[#allocation2 + $0x20] sm:$0xf] %v264
        %271 = vst [vmem:[#allocation2 + $0x28] sm:$0xf] %v265
        %v272 = vld [vmem:[%s189] sm:$0xff]
        %v273 = vld [vmem:[%s189 + $0x8] sm:$0xff]
        %v276 = vcombine.low %v272, %v272
        %v277 = vcombine.low %v273, %v273
        %278 = vrot.lane.b32.xlu0 %v276, 125
        %v279 = vpop.permute.xlu0 %278
        %280 = vrot.lane.b32.xlu0 %v272, 125
        %v281 = vpop.permute.xlu0 %280
        %282 = vrot.lane.b32.xlu0 %v277, 125
        %v283 = vpop.permute.xlu0 %282
        %284 = vrot.lane.b32.xlu0 %v273, 125
        %v285 = vpop.permute.xlu0 %284
        %vm286 = vcmask 1022976
        %v287 = vsel %vm286, %v279, %v281
        %v288 = vsel %vm286, %v281, %v283
        %v289 = vsel %vm286, %v283, %v285
        %293 = vst [vmem:[#allocation2 + $0x18] sm:$0xf0] %v287
        %294 = vst [vmem:[#allocation2 + $0x20] sm:$0xf0] %v288
        %295 = vst [vmem:[#allocation2 + $0x28] sm:$0xf0] %v289
        %v296 = vld [vmem:[%s189] sm:$0xff]
        %v297 = vld [vmem:[%s189 + $0x8] sm:$0xff]
        %v300 = vcombine.high %v296, %v296
        %v301 = vcombine.high %v297, %v297
        %302 = vrot.lane.b32.xlu0 %v296, 124
        %v303 = vpop.permute.xlu0 %302
        %304 = vrot.lane.b32.xlu0 %v300, 124
        %v305 = vpop.permute.xlu0 %304
        %306 = vrot.lane.b32.xlu0 %v297, 124
        %v307 = vpop.permute.xlu0 %306
        %308 = vrot.lane.b32.xlu0 %v301, 124
        %v309 = vpop.permute.xlu0 %308
        %vm310 = vcmask 1014784
        %v311 = vsel %vm310, %v303, %v305
        %v312 = vsel %vm310, %v305, %v307
        %v313 = vsel %vm310, %v307, %v309
        %317 = vst [vmem:[#allocation2 + $0x30] sm:$0xf] %v311
        %318 = vst [vmem:[#allocation2 + $0x38] sm:$0xf] %v312
        %319 = vst [vmem:[#allocation2 + $0x40] sm:$0xf] %v313
        %v320 = vld [vmem:[%s189] sm:$0xff]
        %v321 = vld [vmem:[%s189 + $0x8] sm:$0xff]
        %v324 = vcombine.low %v320, %v320
        %v325 = vcombine.low %v321, %v321
        %326 = vrot.lane.b32.xlu0 %v324, 108
        %v327 = vpop.permute.xlu0 %326
        %328 = vrot.lane.b32.xlu0 %v320, 108
        %v329 = vpop.permute.xlu0 %328
        %330 = vrot.lane.b32.xlu0 %v325, 108
        %v331 = vpop.permute.xlu0 %330
        %332 = vrot.lane.b32.xlu0 %v321, 108
        %v333 = vpop.permute.xlu0 %332
        %vm334 = vcmask 883712
        %v335 = vsel %vm334, %v327, %v329
        %v336 = vsel %vm334, %v329, %v331
        %v337 = vsel %vm334, %v331, %v333
        %341 = vst [vmem:[#allocation2 + $0x30] sm:$0xf0] %v335
        %342 = vst [vmem:[#allocation2 + $0x38] sm:$0xf0] %v336
        %343 = vst [vmem:[#allocation2 + $0x40] sm:$0xf0] %v337
        %v344 = vld [vmem:[%s189] sm:$0xff]
        %v345 = vld [vmem:[%s189 + $0x8] sm:$0xff]
        %v348 = vcombine.high %v344, %v344
        %v349 = vcombine.high %v345, %v345
        %350 = vrot.lane.b32.xlu0 %v344, 107
        %v351 = vpop.permute.xlu0 %350
        %352 = vrot.lane.b32.xlu0 %v348, 107
        %v353 = vpop.permute.xlu0 %352
        %354 = vrot.lane.b32.xlu0 %v345, 107
        %v355 = vpop.permute.xlu0 %354
        %356 = vrot.lane.b32.xlu0 %v349, 107
        %v357 = vpop.permute.xlu0 %356
        %vm358 = vcmask 875520
        %v359 = vsel %vm358, %v351, %v353
        %v360 = vsel %vm358, %v353, %v355
        %v361 = vsel %vm358, %v355, %v357
        %365 = vst [vmem:[#allocation2 + $0x48] sm:$0xf] %v359
        %366 = vst [vmem:[#allocation2 + $0x50] sm:$0xf] %v360
        %367 = vst [vmem:[#allocation2 + $0x58] sm:$0xf] %v361
        %v368 = vld [vmem:[%s189] sm:$0xff]
        %v369 = vld [vmem:[%s189 + $0x8] sm:$0xff]
        %v372 = vcombine.low %v368, %v368
        %v373 = vcombine.low %v369, %v369
        %374 = vrot.lane.b32.xlu0 %v372, 106
        %v375 = vpop.permute.xlu0 %374
        %376 = vrot.lane.b32.xlu0 %v368, 106
        %v377 = vpop.permute.xlu0 %376
        %378 = vrot.lane.b32.xlu0 %v373, 106
        %v379 = vpop.permute.xlu0 %378
        %380 = vrot.lane.b32.xlu0 %v369, 106
        %v381 = vpop.permute.xlu0 %380
        %vm382 = vcmask 867328
        %v383 = vsel %vm382, %v375, %v377
        %v384 = vsel %vm382, %v377, %v379
        %v385 = vsel %vm382, %v379, %v381
        %389 = vst [vmem:[#allocation2 + $0x48] sm:$0xf0] %v383
        %390 = vst [vmem:[#allocation2 + $0x50] sm:$0xf0] %v384
        %391 = vst [vmem:[#allocation2 + $0x58] sm:$0xf0] %v385
        %v392 = vld [vmem:[%s189] sm:$0xff]
        %v393 = vld [vmem:[%s189 + $0x8] sm:$0xff]
        %v396 = vcombine.high %v392, %v392
        %v397 = vcombine.high %v393, %v393
        %398 = vrot.lane.b32.xlu0 %v392, 105
        %v399 = vpop.permute.xlu0 %398
        %400 = vrot.lane.b32.xlu0 %v396, 105
        %v401 = vpop.permute.xlu0 %400
        %402 = vrot.lane.b32.xlu0 %v393, 105
        %v403 = vpop.permute.xlu0 %402
        %404 = vrot.lane.b32.xlu0 %v397, 105
        %v405 = vpop.permute.xlu0 %404
        %vm406 = vcmask 859136
        %v407 = vsel %vm406, %v399, %v401
        %v408 = vsel %vm406, %v401, %v403
        %v409 = vsel %vm406, %v403, %v405
        %413 = vst [vmem:[#allocation2 + $0x60] sm:$0xf] %v407
        %414 = vst [vmem:[#allocation2 + $0x68] sm:$0xf] %v408
        %415 = vst [vmem:[#allocation2 + $0x70] sm:$0xf] %v409
        %v416 = vld [vmem:[%s189] sm:$0xff]
        %v417 = vld [vmem:[%s189 + $0x8] sm:$0xff]
        %v420 = vcombine.low %v416, %v416
        %v421 = vcombine.low %v417, %v417
        %422 = vrot.lane.b32.xlu0 %v420, 104
        %v423 = vpop.permute.xlu0 %422
        %424 = vrot.lane.b32.xlu0 %v416, 104
        %v425 = vpop.permute.xlu0 %424
        %426 = vrot.lane.b32.xlu0 %v421, 104
        %v427 = vpop.permute.xlu0 %426
        %428 = vrot.lane.b32.xlu0 %v417, 104
        %v429 = vpop.permute.xlu0 %428
        %vm430 = vcmask 850944
        %v431 = vsel %vm430, %v423, %v425
        %v432 = vsel %vm430, %v425, %v427
        %v433 = vsel %vm430, %v427, %v429
        %437 = vst [vmem:[#allocation2 + $0x60] sm:$0xf0] %v431
        %438 = vst [vmem:[#allocation2 + $0x68] sm:$0xf0] %v432
        %439 = vst [vmem:[#allocation2 + $0x70] sm:$0xf0] %v433
        %v440 = vld [vmem:[%s189] sm:$0xff]
        %v441 = vld [vmem:[%s189 + $0x8] sm:$0xff]
        %v444 = vcombine.high %v440, %v440
        %v445 = vcombine.high %v441, %v441
        %446 = vrot.lane.b32.xlu0 %v440, 88
        %v447 = vpop.permute.xlu0 %446
        %448 = vrot.lane.b32.xlu0 %v444, 88
        %v449 = vpop.permute.xlu0 %448
        %450 = vrot.lane.b32.xlu0 %v441, 88
        %v451 = vpop.permute.xlu0 %450
        %452 = vrot.lane.b32.xlu0 %v445, 88
        %v453 = vpop.permute.xlu0 %452
        %vm454 = vcmask 719872
        %v455 = vsel %vm454, %v447, %v449
        %v456 = vsel %vm454, %v449, %v451
        %v457 = vsel %vm454, %v451, %v453
        %461 = vst [vmem:[#allocation2 + $0x78] sm:$0xf] %v455
        %462 = vst [vmem:[#allocation2 + $0x80] sm:$0xf] %v456
        %463 = vst [vmem:[#allocation2 + $0x88] sm:$0xf] %v457
        %v464 = vld [vmem:[%s189] sm:$0xff]
        %v465 = vld [vmem:[%s189 + $0x8] sm:$0xff]
        %v468 = vcombine.low %v464, %v464
        %v469 = vcombine.low %v465, %v465
        %470 = vrot.lane.b32.xlu0 %v468, 87
        %v471 = vpop.permute.xlu0 %470
        %472 = vrot.lane.b32.xlu0 %v464, 87
        %v473 = vpop.permute.xlu0 %472
        %474 = vrot.lane.b32.xlu0 %v469, 87
        %v475 = vpop.permute.xlu0 %474
        %476 = vrot.lane.b32.xlu0 %v465, 87
        %v477 = vpop.permute.xlu0 %476
        %vm478 = vcmask 711680
        %v479 = vsel %vm478, %v471, %v473
        %v480 = vsel %vm478, %v473, %v475
        %v481 = vsel %vm478, %v475, %v477
        %485 = vst [vmem:[#allocation2 + $0x78] sm:$0xf0] %v479
        %486 = vst [vmem:[#allocation2 + $0x80] sm:$0xf0] %v480
        %487 = vst [vmem:[#allocation2 + $0x88] sm:$0xf0] %v481
        %v488 = vld [vmem:[%s189] sm:$0xff]
        %v489 = vld [vmem:[%s189 + $0x8] sm:$0xff]
        %v492 = vcombine.high %v488, %v488
        %v493 = vcombine.high %v489, %v489
        %494 = vrot.lane.b32.xlu0 %v488, 86
        %v495 = vpop.permute.xlu0 %494
        %496 = vrot.lane.b32.xlu0 %v492, 86
        %v497 = vpop.permute.xlu0 %496
        %498 = vrot.lane.b32.xlu0 %v489, 86
        %v499 = vpop.permute.xlu0 %498
        %500 = vrot.lane.b32.xlu0 %v493, 86
        %v501 = vpop.permute.xlu0 %500
        %vm502 = vcmask 703488
        %v503 = vsel %vm502, %v495, %v497
        %v504 = vsel %vm502, %v497, %v499
        %v505 = vsel %vm502, %v499, %v501
        %509 = vst [vmem:[#allocation2 + $0x90] sm:$0xf] %v503
        %510 = vst [vmem:[#allocation2 + $0x98] sm:$0xf] %v504
        %511 = vst [vmem:[#allocation2 + $0xa0] sm:$0xf] %v505
        %v512 = vld [vmem:[%s189] sm:$0xff]
        %v513 = vld [vmem:[%s189 + $0x8] sm:$0xff]
        %v516 = vcombine.low %v512, %v512
        %v517 = vcombine.low %v513, %v513
        %518 = vrot.lane.b32.xlu0 %v516, 85
        %v519 = vpop.permute.xlu0 %518
        %520 = vrot.lane.b32.xlu0 %v512, 85
        %v521 = vpop.permute.xlu0 %520
        %522 = vrot.lane.b32.xlu0 %v517, 85
        %v523 = vpop.permute.xlu0 %522
        %524 = vrot.lane.b32.xlu0 %v513, 85
        %v525 = vpop.permute.xlu0 %524
        %vm526 = vcmask 695296
        %v527 = vsel %vm526, %v519, %v521
        %v528 = vsel %vm526, %v521, %v523
        %v529 = vsel %vm526, %v523, %v525
        %533 = vst [vmem:[#allocation2 + $0x90] sm:$0xf0] %v527
        %534 = vst [vmem:[#allocation2 + $0x98] sm:$0xf0] %v528
        %535 = vst [vmem:[#allocation2 + $0xa0] sm:$0xf0] %v529
        %v536 = vld [vmem:[%s189] sm:$0xff]
        %v537 = vld [vmem:[%s189 + $0x8] sm:$0xff]
        %v540 = vcombine.high %v536, %v536
        %v541 = vcombine.high %v537, %v537
        %542 = vrot.lane.b32.xlu0 %v536, 84
        %v543 = vpop.permute.xlu0 %542
        %544 = vrot.lane.b32.xlu0 %v540, 84
        %v545 = vpop.permute.xlu0 %544
        %546 = vrot.lane.b32.xlu0 %v537, 84
        %v547 = vpop.permute.xlu0 %546
        %548 = vrot.lane.b32.xlu0 %v541, 84
        %v549 = vpop.permute.xlu0 %548
        %vm550 = vcmask 687104
        %v551 = vsel %vm550, %v543, %v545
        %v552 = vsel %vm550, %v545, %v547
        %v553 = vsel %vm550, %v547, %v549
        %557 = vst [vmem:[#allocation2 + $0xa8] sm:$0xf] %v551
        %558 = vst [vmem:[#allocation2 + $0xb0] sm:$0xf] %v552
        %559 = vst [vmem:[#allocation2 + $0xb8] sm:$0xf] %v553
        %v560 = vld [vmem:[%s189] sm:$0xff]
        %v561 = vld [vmem:[%s189 + $0x8] sm:$0xff]
        %v564 = vcombine.low %v560, %v560
        %v565 = vcombine.low %v561, %v561
        %566 = vrot.lane.b32.xlu0 %v564, 68
        %v567 = vpop.permute.xlu0 %566
        %568 = vrot.lane.b32.xlu0 %v560, 68
        %v569 = vpop.permute.xlu0 %568
        %570 = vrot.lane.b32.xlu0 %v565, 68
        %v571 = vpop.permute.xlu0 %570
        %572 = vrot.lane.b32.xlu0 %v561, 68
        %v573 = vpop.permute.xlu0 %572
        %vm574 = vcmask 556032
        %v575 = vsel %vm574, %v567, %v569
        %v576 = vsel %vm574, %v569, %v571
        %v577 = vsel %vm574, %v571, %v573
        %581 = vst [vmem:[#allocation2 + $0xa8] sm:$0xf0] %v575
        %582 = vst [vmem:[#allocation2 + $0xb0] sm:$0xf0] %v576
        %583 = vst [vmem:[#allocation2 + $0xb8] sm:$0xf0] %v577
        %v584 = vld [vmem:[%s189] sm:$0xff]
        %v585 = vld [vmem:[%s189 + $0x8] sm:$0xff]
        %v588 = vcombine.high %v584, %v584
        %v589 = vcombine.high %v585, %v585
        %590 = vrot.lane.b32.xlu0 %v584, 67
        %v591 = vpop.permute.xlu0 %590
        %592 = vrot.lane.b32.xlu0 %v588, 67
        %v593 = vpop.permute.xlu0 %592
        %594 = vrot.lane.b32.xlu0 %v585, 67
        %v595 = vpop.permute.xlu0 %594
        %596 = vrot.lane.b32.xlu0 %v589, 67
        %v597 = vpop.permute.xlu0 %596
        %vm598 = vcmask 547840
        %v599 = vsel %vm598, %v591, %v593
        %v600 = vsel %vm598, %v593, %v595
        %v601 = vsel %vm598, %v595, %v597
        %605 = vst [vmem:[#allocation2 + $0xc0] sm:$0xf] %v599
        %606 = vst [vmem:[#allocation2 + $0xc8] sm:$0xf] %v600
        %607 = vst [vmem:[#allocation2 + $0xd0] sm:$0xf] %v601
        %v608 = vld [vmem:[%s189] sm:$0xff]
        %v609 = vld [vmem:[%s189 + $0x8] sm:$0xff]
        %v612 = vcombine.low %v608, %v608
        %v613 = vcombine.low %v609, %v609
        %614 = vrot.lane.b32.xlu0 %v612, 66
        %v615 = vpop.permute.xlu0 %614
        %616 = vrot.lane.b32.xlu0 %v608, 66
        %v617 = vpop.permute.xlu0 %616
        %618 = vrot.lane.b32.xlu0 %v613, 66
        %v619 = vpop.permute.xlu0 %618
        %620 = vrot.lane.b32.xlu0 %v609, 66
        %v621 = vpop.permute.xlu0 %620
        %vm622 = vcmask 539648
        %v623 = vsel %vm622, %v615, %v617
        %v624 = vsel %vm622, %v617, %v619
        %v625 = vsel %vm622, %v619, %v621
        %629 = vst [vmem:[#allocation2 + $0xc0] sm:$0xf0] %v623
        %630 = vst [vmem:[#allocation2 + $0xc8] sm:$0xf0] %v624
        %631 = vst [vmem:[#allocation2 + $0xd0] sm:$0xf0] %v625
        %v632 = vld [vmem:[%s189] sm:$0xff]
        %v633 = vld [vmem:[%s189 + $0x8] sm:$0xff]
        %v636 = vcombine.high %v632, %v632
        %v637 = vcombine.high %v633, %v633
        %638 = vrot.lane.b32.xlu0 %v632, 65
        %v639 = vpop.permute.xlu0 %638
        %640 = vrot.lane.b32.xlu0 %v636, 65
        %v641 = vpop.permute.xlu0 %640
        %642 = vrot.lane.b32.xlu0 %v633, 65
        %v643 = vpop.permute.xlu0 %642
        %644 = vrot.lane.b32.xlu0 %v637, 65
        %v645 = vpop.permute.xlu0 %644
        %vm646 = vcmask 531456
        %v647 = vsel %vm646, %v639, %v641
        %v648 = vsel %vm646, %v641, %v643
        %v649 = vsel %vm646, %v643, %v645
        %653 = vst [vmem:[#allocation2 + $0xd8] sm:$0xf] %v647
        %654 = vst [vmem:[#allocation2 + $0xe0] sm:$0xf] %v648
        %655 = vst [vmem:[#allocation2 + $0xe8] sm:$0xf] %v649
        %v656 = vld [vmem:[%s189] sm:$0xff]
        %v657 = vld [vmem:[%s189 + $0x8] sm:$0xff]
        %v660 = vcombine.low %v656, %v656
        %v661 = vcombine.low %v657, %v657
        %662 = vrot.lane.b32.xlu0 %v660, 64
        %v663 = vpop.permute.xlu0 %662
        %664 = vrot.lane.b32.xlu0 %v656, 64
        %v665 = vpop.permute.xlu0 %664
        %666 = vrot.lane.b32.xlu0 %v661, 64
        %v667 = vpop.permute.xlu0 %666
        %668 = vrot.lane.b32.xlu0 %v657, 64
        %v669 = vpop.permute.xlu0 %668
        %vm670 = vcmask 523264
        %v671 = vsel %vm670, %v663, %v665
        %v672 = vsel %vm670, %v665, %v667
        %v673 = vsel %vm670, %v667, %v669
        %677 = vst [vmem:[#allocation2 + $0xd8] sm:$0xf0] %v671
        %678 = vst [vmem:[#allocation2 + $0xe0] sm:$0xf0] %v672
        %679 = vst [vmem:[#allocation2 + $0xe8] sm:$0xf0] %v673
        %v680 = vld [vmem:[%s189] sm:$0xff]
        %v681 = vld [vmem:[%s189 + $0x8] sm:$0xff]
        %v684 = vcombine.high %v680, %v680
        %v685 = vcombine.high %v681, %v681
        %686 = vrot.lane.b32.xlu0 %v680, 48
        %v687 = vpop.permute.xlu0 %686
        %688 = vrot.lane.b32.xlu0 %v684, 48
        %v689 = vpop.permute.xlu0 %688
        %690 = vrot.lane.b32.xlu0 %v681, 48
        %v691 = vpop.permute.xlu0 %690
        %692 = vrot.lane.b32.xlu0 %v685, 48
        %v693 = vpop.permute.xlu0 %692
        %vm694 = vcmask 392192
        %v695 = vsel %vm694, %v687, %v689
        %v696 = vsel %vm694, %v689, %v691
        %v697 = vsel %vm694, %v691, %v693
        %701 = vst [vmem:[#allocation2 + $0xf0] sm:$0xf] %v695
        %702 = vst [vmem:[#allocation2 + $0xf8] sm:$0xf] %v696
        %703 = vst [vmem:[#allocation2 + $0x100] sm:$0xf] %v697
        %v704 = vld [vmem:[%s189] sm:$0xff]
        %v705 = vld [vmem:[%s189 + $0x8] sm:$0xff]
        %v708 = vcombine.low %v704, %v704
        %v709 = vcombine.low %v705, %v705
        %710 = vrot.lane.b32.xlu0 %v708, 47
        %v711 = vpop.permute.xlu0 %710
        %712 = vrot.lane.b32.xlu0 %v704, 47
        %v713 = vpop.permute.xlu0 %712
        %714 = vrot.lane.b32.xlu0 %v709, 47
        %v715 = vpop.permute.xlu0 %714
        %716 = vrot.lane.b32.xlu0 %v705, 47
        %v717 = vpop.permute.xlu0 %716
        %vm718 = vcmask 384000
        %v719 = vsel %vm718, %v711, %v713
        %v720 = vsel %vm718, %v713, %v715
        %v721 = vsel %vm718, %v715, %v717
        %725 = vst [vmem:[#allocation2 + $0xf0] sm:$0xf0] %v719
        %726 = vst [vmem:[#allocation2 + $0xf8] sm:$0xf0] %v720
        %727 = vst [vmem:[#allocation2 + $0x100] sm:$0xf0] %v721
        %v728 = vld [vmem:[%s189] sm:$0xff]
        %v729 = vld [vmem:[%s189 + $0x8] sm:$0xff]
        %v732 = vcombine.high %v728, %v728
        %v733 = vcombine.high %v729, %v729
        %734 = vrot.lane.b32.xlu0 %v728, 46
        %v735 = vpop.permute.xlu0 %734
        %736 = vrot.lane.b32.xlu0 %v732, 46
        %v737 = vpop.permute.xlu0 %736
        %738 = vrot.lane.b32.xlu0 %v729, 46
        %v739 = vpop.permute.xlu0 %738
        %740 = vrot.lane.b32.xlu0 %v733, 46
        %v741 = vpop.permute.xlu0 %740
        %vm742 = vcmask 375808
        %v743 = vsel %vm742, %v735, %v737
        %v744 = vsel %vm742, %v737, %v739
        %v745 = vsel %vm742, %v739, %v741
        %749 = vst [vmem:[#allocation2 + $0x108] sm:$0xf] %v743
        %750 = vst [vmem:[#allocation2 + $0x110] sm:$0xf] %v744
        %751 = vst [vmem:[#allocation2 + $0x118] sm:$0xf] %v745
        %v752 = vld [vmem:[%s189] sm:$0xff]
        %v753 = vld [vmem:[%s189 + $0x8] sm:$0xff]
        %v756 = vcombine.low %v752, %v752
        %v757 = vcombine.low %v753, %v753
        %758 = vrot.lane.b32.xlu0 %v756, 45
        %v759 = vpop.permute.xlu0 %758
        %760 = vrot.lane.b32.xlu0 %v752, 45
        %v761 = vpop.permute.xlu0 %760
        %762 = vrot.lane.b32.xlu0 %v757, 45
        %v763 = vpop.permute.xlu0 %762
        %764 = vrot.lane.b32.xlu0 %v753, 45
        %v765 = vpop.permute.xlu0 %764
        %vm766 = vcmask 367616
        %v767 = vsel %vm766, %v759, %v761
        %v768 = vsel %vm766, %v761, %v763
        %v769 = vsel %vm766, %v763, %v765
        %773 = vst [vmem:[#allocation2 + $0x108] sm:$0xf0] %v767
        %774 = vst [vmem:[#allocation2 + $0x110] sm:$0xf0] %v768
        %775 = vst [vmem:[#allocation2 + $0x118] sm:$0xf0] %v769
        %v776 = vld [vmem:[%s189] sm:$0xff]
        %v777 = vld [vmem:[%s189 + $0x8] sm:$0xff]
        %v780 = vcombine.high %v776, %v776
        %v781 = vcombine.high %v777, %v777
        %782 = vrot.lane.b32.xlu0 %v776, 44
        %v783 = vpop.permute.xlu0 %782
        %784 = vrot.lane.b32.xlu0 %v780, 44
        %v785 = vpop.permute.xlu0 %784
        %786 = vrot.lane.b32.xlu0 %v777, 44
        %v787 = vpop.permute.xlu0 %786
        %788 = vrot.lane.b32.xlu0 %v781, 44
        %v789 = vpop.permute.xlu0 %788
        %vm790 = vcmask 359424
        %v791 = vsel %vm790, %v783, %v785
        %v792 = vsel %vm790, %v785, %v787
        %v793 = vsel %vm790, %v787, %v789
        %797 = vst [vmem:[#allocation2 + $0x120] sm:$0xf] %v791
        %798 = vst [vmem:[#allocation2 + $0x128] sm:$0xf] %v792
        %799 = vst [vmem:[#allocation2 + $0x130] sm:$0xf] %v793
        %800 = vst [vmem:[#allocation2 + $0x120] sm:$0xf0] 0.0
        %801 = vst [vmem:[#allocation2 + $0x128] sm:$0xf0] 0.0
        %802 = vst [vmem:[#allocation2 + $0x130] sm:$0xf0] 0.0
        %v803 = vld [vmem:[%s180] sm:$0xff]
        %v804 = vld [vmem:[#allocation2] sm:$0xff]
        %v805 = vld [vmem:[#allocation2 + $0x8] sm:$0xff]
        %v806 = vld [vmem:[#allocation2 + $0x10] sm:$0xff]
        %v807 = vld [vmem:[#allocation2 + $0x18] sm:$0xff]
        %v808 = vld [vmem:[#allocation2 + $0x20] sm:$0xff]
        %v809 = vld [vmem:[#allocation2 + $0x28] sm:$0xff]
        %v810 = vld [vmem:[#allocation2 + $0x30] sm:$0xff]
        %v811 = vld [vmem:[#allocation2 + $0x38] sm:$0xff]
        %v812 = vld [vmem:[#allocation2 + $0x40] sm:$0xff]
        %v813 = vld [vmem:[#allocation2 + $0x48] sm:$0xff]
        %v814 = vld [vmem:[#allocation2 + $0x50] sm:$0xff]
        %v815 = vld [vmem:[#allocation2 + $0x58] sm:$0xff]
        %v816 = vld [vmem:[#allocation2 + $0x60] sm:$0xff]
        %v817 = vld [vmem:[#allocation2 + $0x68] sm:$0xff]
        %v818 = vld [vmem:[#allocation2 + $0x70] sm:$0xff]
        %v819 = vld [vmem:[#allocation2 + $0x78] sm:$0xff]
        %v820 = vld [vmem:[#allocation2 + $0x80] sm:$0xff]
        %v821 = vld [vmem:[#allocation2 + $0x88] sm:$0xff]
        %v822 = vld [vmem:[#allocation2 + $0x90] sm:$0xff]
        %v823 = vld [vmem:[#allocation2 + $0x98] sm:$0xff]
        %v824 = vld [vmem:[#allocation2 + $0xa0] sm:$0xff]
        %v825 = vld [vmem:[#allocation2 + $0xa8] sm:$0xff]
        %v826 = vld [vmem:[#allocation2 + $0xb0] sm:$0xff]
        %v827 = vld [vmem:[#allocation2 + $0xb8] sm:$0xff]
        %v828 = vld [vmem:[#allocation2 + $0xc0] sm:$0xff]
        %v829 = vld [vmem:[#allocation2 + $0xc8] sm:$0xff]
        %v830 = vld [vmem:[#allocation2 + $0xd0] sm:$0xff]
        %v831 = vld [vmem:[#allocation2 + $0xd8] sm:$0xff]
        %v832 = vld [vmem:[#allocation2 + $0xe0] sm:$0xff]
        %v833 = vld [vmem:[#allocation2 + $0xe8] sm:$0xff]
        %v834 = vld [vmem:[#allocation2 + $0xf0] sm:$0xff]
        %v835 = vld [vmem:[#allocation2 + $0xf8] sm:$0xff]
        %v836 = vld [vmem:[#allocation2 + $0x100] sm:$0xff]
        %v837 = vld [vmem:[#allocation2 + $0x108] sm:$0xff]
        %v838 = vld [vmem:[#allocation2 + $0x110] sm:$0xff]
        %v839 = vld [vmem:[#allocation2 + $0x118] sm:$0xff]
        %v840 = vld [vmem:[#allocation2 + $0x120] sm:$0xff]
        %v841 = vld [vmem:[#allocation2 + $0x128] sm:$0xff]
        %v842 = vld [vmem:[#allocation2 + $0x130] sm:$0xff]
        %v844 = vsel %vm430, %v803, 0
        %846 = vmatprep.subr.mxu0 0.0
        %847 = vmatpush1.msra.mxu0 0.0
        %848 = vmatprep.subr.mxu0 0.0
        %849 = vmatpush1.msra.mxu0 0.0
        %850 = vmatprep.subr.mxu0 0.0
        %851 = vmatpush1.msra.mxu0 0.0
        %852 = vmatprep.subr.mxu0 %v841
        %853 = vmatpush1.msra.mxu0 %v840
        %854 = vmatprep.subr.mxu0 %v838
        %855 = vmatpush1.msra.mxu0 %v837
        %856 = vmatprep.subr.mxu0 %v835
        %857 = vmatpush1.msra.mxu0 %v834
        %858 = vmatprep.subr.mxu0 %v832
        %859 = vmatpush1.msra.mxu0 %v831
        %860 = vmatprep.subr.mxu0 %v829
        %861 = vmatpush1.msra.mxu0 %v828
        %862 = vmatprep.subr.mxu0 %v826
        %863 = vmatpush1.msra.mxu0 %v825
        %864 = vmatprep.subr.mxu0 %v823
        %865 = vmatpush1.msra.mxu0 %v822
        %866 = vmatprep.subr.mxu0 %v820
        %867 = vmatpush1.msra.mxu0 %v819
        %868 = vmatprep.subr.mxu0 %v817
        %869 = vmatpush1.msra.mxu0 %v816
        %870 = vmatprep.subr.mxu0 %v814
        %871 = vmatpush1.msra.mxu0 %v813
        %872 = vmatprep.subr.mxu0 %v811
        %873 = vmatpush1.msra.mxu0 %v810
        %874 = vmatprep.subr.mxu0 %v808
        %875 = vmatpush1.msra.mxu0 %v807
        %876 = vmatprep.subr.mxu0 %v805
        %877 = vmatpush1.msra.mxu0 %v804
        %878 = vmatprep.subr.mxu0 0.0
        %879 = vmatpush2.msra.mxu0 0.0
        %880 = vmatprep.subr.mxu0 0.0
        %881 = vmatpush2.msra.mxu0 0.0
        %882 = vmatprep.subr.mxu0 0.0
        %883 = vmatpush2.msra.mxu0 0.0
        %884 = vmatprep.subr.mxu0 0.0
        %885 = vmatpush2.msra.mxu0 0.0
        %886 = vmatprep.subr.mxu0 0.0
        %887 = vmatpush2.msra.mxu0 0.0
        %888 = vmatprep.subr.mxu0 0.0
        %889 = vmatpush2.msra.mxu0 0.0
        %890 = vmatprep.subr.mxu0 0.0
        %891 = vmatpush2.msra.mxu0 0.0
        %892 = vmatprep.subr.mxu0 0.0
        %893 = vmatpush2.msra.mxu0 0.0
        %894 = vmatprep.subr.mxu0 0.0
        %895 = vmatpush2.msra.mxu0 0.0
        %896 = vmatprep.subr.mxu0 0.0
        %897 = vmatpush2.msra.mxu0 0.0
        %898 = vmatprep.subr.mxu0 0.0
        %899 = vmatpush2.msra.mxu0 0.0
        %900 = vmatprep.subr.mxu0 0.0
        %901 = vmatpush2.msra.mxu0 0.0
        %902 = vmatprep.subr.mxu0 0.0
        %903 = vmatpush2.msra.mxu0 0.0
        %904 = vmatprep.subr.mxu0 0.0
        %905 = vmatpush2.msra.mxu0 0.0
        %906 = vmatprep.subr.mxu0 0.0
        %907 = vmatpush2.msra.mxu0 0.0
        %908 = vmatprep.subr.mxu0 0.0
        %909 = vmatpush2.msra.mxu0 0.0
        %910 = vmatprep.mubr.f32.mxu0 0.0
        %911 = vmatmul.mubr.f32.gmra.mxu0 %v844
        %v912 = vpop.f32.mrf.mxu0
        %v913 = vadd.f32 0.0, %v912
        %v914 = vpop.f32.mrf.mxu0
        %v915 = vadd.f32 0.0, %v914
        %916 = vdwg.mxu0
        %917 = vmatprep.subr.mxu0 0.0
        %918 = vmatpush1.msra.mxu0 0.0
        %919 = vmatprep.subr.mxu0 0.0
        %920 = vmatpush1.msra.mxu0 0.0
        %921 = vmatprep.subr.mxu0 0.0
        %922 = vmatpush1.msra.mxu0 0.0
        %923 = vmatprep.subr.mxu0 0.0
        %924 = vmatpush1.msra.mxu0 %v842
        %925 = vmatprep.subr.mxu0 0.0
        %926 = vmatpush1.msra.mxu0 %v839
        %927 = vmatprep.subr.mxu0 0.0
        %928 = vmatpush1.msra.mxu0 %v836
        %929 = vmatprep.subr.mxu0 0.0
        %930 = vmatpush1.msra.mxu0 %v833
        %931 = vmatprep.subr.mxu0 0.0
        %932 = vmatpush1.msra.mxu0 %v830
        %933 = vmatprep.subr.mxu0 0.0
        %934 = vmatpush1.msra.mxu0 %v827
        %935 = vmatprep.subr.mxu0 0.0
        %936 = vmatpush1.msra.mxu0 %v824
        %937 = vmatprep.subr.mxu0 0.0
        %938 = vmatpush1.msra.mxu0 %v821
        %939 = vmatprep.subr.mxu0 0.0
        %940 = vmatpush1.msra.mxu0 %v818
        %941 = vmatprep.subr.mxu0 0.0
        %942 = vmatpush1.msra.mxu0 %v815
        %943 = vmatprep.subr.mxu0 0.0
        %944 = vmatpush1.msra.mxu0 %v812
        %945 = vmatprep.subr.mxu0 0.0
        %946 = vmatpush1.msra.mxu0 %v809
        %947 = vmatprep.subr.mxu0 0.0
        %948 = vmatpush1.msra.mxu0 %v806
        %949 = vmatprep.subr.mxu0 0.0
        %950 = vmatpush2.msra.mxu0 0.0
        %951 = vmatprep.subr.mxu0 0.0
        %952 = vmatpush2.msra.mxu0 0.0
        %953 = vmatprep.subr.mxu0 0.0
        %954 = vmatpush2.msra.mxu0 0.0
        %955 = vmatprep.subr.mxu0 0.0
        %956 = vmatpush2.msra.mxu0 0.0
        %957 = vmatprep.subr.mxu0 0.0
        %958 = vmatpush2.msra.mxu0 0.0
        %959 = vmatprep.subr.mxu0 0.0
        %960 = vmatpush2.msra.mxu0 0.0
        %961 = vmatprep.subr.mxu0 0.0
        %962 = vmatpush2.msra.mxu0 0.0
        %963 = vmatprep.subr.mxu0 0.0
        %964 = vmatpush2.msra.mxu0 0.0
        %965 = vmatprep.subr.mxu0 0.0
        %966 = vmatpush2.msra.mxu0 0.0
        %967 = vmatprep.subr.mxu0 0.0
        %968 = vmatpush2.msra.mxu0 0.0
        %969 = vmatprep.subr.mxu0 0.0
        %970 = vmatpush2.msra.mxu0 0.0
        %971 = vmatprep.subr.mxu0 0.0
        %972 = vmatpush2.msra.mxu0 0.0
        %973 = vmatprep.subr.mxu0 0.0
        %974 = vmatpush2.msra.mxu0 0.0
        %975 = vmatprep.subr.mxu0 0.0
        %976 = vmatpush2.msra.mxu0 0.0
        %977 = vmatprep.subr.mxu0 0.0
        %978 = vmatpush2.msra.mxu0 0.0
        %979 = vmatprep.subr.mxu0 0.0
        %980 = vmatpush2.msra.mxu0 0.0
        %981 = vmatprep.mubr.f32.mxu0 0.0
        %982 = vmatmul.mubr.f32.gmra.mxu0 %v844
        %v983 = vpop.f32.mrf.mxu0
        %v984 = vadd.f32 0.0, %v983
        %v985 = vpop.f32.mrf.mxu0
        %986 = vdwg.mxu0
        %987 = vst [vmem:[%s214] sm:$0xff] %v913
        %988 = vst [vmem:[%s214 + $0x8] sm:$0xff] %v915
        %989 = vst [vmem:[%s214 + $0x10] sm:$0xff] %v984
        %s990 = sand.u32 %s98, 1
        %s991 = scalar_lea.sflag [#allocation5], %s990
        %s992 = sand.u32 %s98, 1
        %s993 = smul.addr %s992, 24
        %s994 = scalar_lea.vmem [#allocation8], %s993
        // Predicated region
        $region37: #{tpu_custom_call.1} parent=27 // pred_check
          %p995 = pneg %p108
        $region38: #{tpu_custom_call.1} parent=27 // pred_check_branch
          %997 = sbr.rel (%p995) target = $region40
        $region39: #{tpu_custom_call.1} parent=27 // pred_region
          %s998 = smul.u32 3, %s27
          %s1000 = ssub.s32 384, 384
          %1001 = vsyncadd %s991, %s1000
          %s1002 = smul.addr %s26, 3
          %s1003 = sadd.s32 %s998, %s1002
          %s1004 = smul.addr %s1003, 128
          %s1005 = scalar_lea.hbm %s2, %s1004
          %s1007 = sshll.u32 %s994, 4
          %s1008 = int_to_ptr.vmem [resolvable:$true] %s1007
          %1010 = dma.vmem_to_hbm [thread:$0]  %s1008, 384, %s1005, %s991
        $region40: #{tpu_custom_call.1} parent=27 // pred_fallthru
          _
      $region28: #{tpu_custom_call.1} parent=5 // pred_fallthru
        _
      %p1011 = scmp.le.s32.totalorder 2, %s17
      // Predicated region
      $region41: #{tpu_custom_call.1} parent=5 // pred_check
        %p1012 = pneg %p1011
      $region42: #{tpu_custom_call.1} parent=5 // pred_check_branch
        %1014 = sbr.rel (%p1012) target = $region44
      $region43: #{tpu_custom_call.1} parent=5 // pred_region
        %s1015 = ssub.s32 %s17, 2
        // Predicated region
        $region45: #{tpu_custom_call.1} parent=43 // pred_check
          %p1016 = pneg %p114
        $region46: #{tpu_custom_call.1} parent=43 // pred_check_branch
          %1018 = sbr.rel (%p1016) target = $region48
        $region47: #{tpu_custom_call.1} parent=43 // pred_region
          %s1019 = sand.u32 %s99, 1
          %s1020 = scalar_lea.sflag [#allocation5], %s1019
          %s1021 = sand.u32 %s99, 1
          %s1022 = smul.addr %s1021, 24
          %s1023 = scalar_lea.vmem [#allocation8], %s1022
          %1024 = dma.done %s1020, 384
        $region48: #{tpu_custom_call.1} parent=43 // pred_fallthru
          _
      $region44: #{tpu_custom_call.1} parent=5 // pred_fallthru
        _
    $region6: #{tpu_custom_call.1} parent=1 // loop_footer
      %s21 = sadd.s32 1, %s17
    $region7: #{tpu_custom_call.1} parent=1 // loop_footer_branch
      %16 = sbr.rel target = $region3
    $region8: #{tpu_custom_call.1} parent=1 // loop_exit
      _
    %1025 = vsyncpa [#allocation4], 1
    %s1026 = scalar_lea.sflag [#allocation4], 1
    %1027 = vsyncpa %s1026, 1
    %1028 = vsyncpa [#allocation7], 1
    %s1029 = scalar_lea.sflag [#allocation7], 1
    %1030 = vsyncpa %s1029, 1
    %1031 = vsyncpa [#allocation5], 1
    %s1032 = scalar_lea.sflag [#allocation5], 1
    %1033 = vsyncpa %s1032, 1

</llo_original>
